<compile_context>
chip_gen: v6e
topology: v6e:2x2x1
jax: 0.10.0
libtpu: 0.0.40
codegen_flags: <defaults>
</compile_context>

<pallas_src>
import jax
import jax.numpy as jnp
from jax.experimental import pallas as pl
from jax.experimental.pallas import tpu as pltpu

H1, H2 = 50, 40          # hidden sizes from the module __init__
H_PAD = 64               # 50 and 40 both padded (with zeros) up to 64
LANE = 128               # TPU lane width: pad nb_movies to a multiple of this
SUBLANE = 8              # batch-tile granularity
VMEM_BUDGET = 48 * 1024 * 1024   # fits v7x (64 MiB physical) with headroom,
                                 # raises v5e's 16 MiB default scoped limit.


def _round_up(n, m):
    return (n + m - 1) // m * m


def _sigmoid(z):
    # exp() runs on the EUP. pl.reciprocal(approx=True) would route the 1/x to
    # the EUP as well (keeping VALU slots free), but the hw-approx form costs
    # ~1e-4 relative error; exact reciprocal is used so the 1e-5 check holds.
    # TODO(synk): flip to approx=True (and bf16 HBM I/O) in production where
    # recommendation-score tolerances allow it.
    return pl.reciprocal(1.0 + jnp.exp(-z), approx=False)


def sae_kernel(x_ref, w1_ref, b1_ref, w2_ref, b2_ref,
               w3_ref, b3_ref, w4_ref, b4_ref, o_ref):
    # All four layers fused: intermediates never leave VMEM/vregs.
    h = _sigmoid(jnp.dot(x_ref[...], w1_ref[...],
                         preferred_element_type=jnp.float32) + b1_ref[...])
    h = _sigmoid(jnp.dot(h, w2_ref[...],
                         preferred_element_type=jnp.float32) + b2_ref[...])
    h = _sigmoid(jnp.dot(h, w3_ref[...],
                         preferred_element_type=jnp.float32) + b3_ref[...])
    o_ref[...] = (jnp.dot(h, w4_ref[...],
                          preferred_element_type=jnp.float32) + b4_ref[...])


def _pad_params(params, nb_movies):
    """Zero-pad weights/biases to lane/sublane-friendly shapes (math unchanged)."""
    m_pad = _round_up(nb_movies, LANE)

    def pad(a, rows, cols):
        return jnp.pad(a, ((0, rows - a.shape[0]), (0, cols - a.shape[1])))

    return dict(
        w1=pad(params["w1"], m_pad, H_PAD), b1=pad(params["b1"], 1, H_PAD),
        w2=pad(params["w2"], H_PAD, H_PAD), b2=pad(params["b2"], 1, H_PAD),
        w3=pad(params["w3"], H_PAD, H_PAD), b3=pad(params["b3"], 1, H_PAD),
        w4=pad(params["w4"], H_PAD, m_pad), b4=pad(params["b4"], 1, m_pad),
    )


def _pick_batch_tile(nb_rows, m_pad, vmem_budget_bytes):
    """Largest batch tile that keeps resident weights + double-buffered row
    tiles under the VMEM budget (amortizes ~0.35 us/grid-step overhead)."""
    weight_bytes = 4 * (2 * m_pad * H_PAD + 2 * H_PAD * H_PAD
                        + 2 * H_PAD + 2 * m_pad)
    per_row_bytes = 2 * 2 * m_pad * 4          # (x + out) tiles, 2 buffers, f32
    budget = vmem_budget_bytes - weight_bytes - (2 << 20)   # 2 MiB headroom
    tb = budget // per_row_bytes
    tb = max(SUBLANE, min(tb, 1024, _round_up(nb_rows, SUBLANE)))
    return int(tb - tb % SUBLANE)


def sae_forward(x, params, *, batch_tile=None, vmem_budget_bytes=VMEM_BUDGET):
    """x: (B, nb_movies) f32. params: dict of (in,out) weights / (1,out) biases.
    Returns (B, nb_movies) f32."""
    b, nb_movies = x.shape
    m_pad = _round_up(nb_movies, LANE)
    pp = _pad_params(params, nb_movies)

    tb = (_round_up(batch_tile, SUBLANE) if batch_tile
          else _pick_batch_tile(b, m_pad, vmem_budget_bytes))
    b_pad = _round_up(b, tb)

    x_pad = jnp.pad(x.astype(jnp.float32),
                    ((0, b_pad - b), (0, m_pad - nb_movies)))

    # Row tiles advance with the (parallel) batch grid axis.
    row_spec = pl.BlockSpec((tb, m_pad), lambda i: (i, 0))

    # Weights/biases: whole array, pinned to block (0, 0) on every grid step
    # -> DMA'd once, VMEM-resident across the whole grid.
    def const_spec(a):
        return pl.BlockSpec(a.shape, lambda i: (0, 0))

    out = pl.pallas_call(
        sae_kernel,
        out_shape=jax.ShapeDtypeStruct((b_pad, m_pad), jnp.float32),
        grid=(b_pad // tb,),
        in_specs=[row_spec,
                  const_spec(pp["w1"]), const_spec(pp["b1"]),
                  const_spec(pp["w2"]), const_spec(pp["b2"]),
                  const_spec(pp["w3"]), const_spec(pp["b3"]),
                  const_spec(pp["w4"]), const_spec(pp["b4"])],
        out_specs=row_spec,
        compiler_params=pltpu.CompilerParams(
            dimension_semantics=("parallel",),          # megacore split on v7x
            vmem_limit_bytes=vmem_budget_bytes),
    )(x_pad, pp["w1"], pp["b1"], pp["w2"], pp["b2"],
      pp["w3"], pp["b3"], pp["w4"], pp["b4"])

    return out[:b, :nb_movies]


def init_params(key, nb_movies):
    """Deterministic synthetic init matching nn.Linear shapes (stored as (in, out))."""
    ks = jax.random.split(key, 8)

    def lin(kw, kb, fan_in, fan_out):
        bound = 1.0 / jnp.sqrt(fan_in)
        w = jax.random.uniform(kw, (fan_in, fan_out), jnp.float32, -bound, bound)
        b = jax.random.uniform(kb, (1, fan_out), jnp.float32, -bound, bound)
        return w, b

    w1, b1 = lin(ks[0], ks[1], nb_movies, H1)
    w2, b2 = lin(ks[2], ks[3], H1, H2)
    w3, b3 = lin(ks[4], ks[5], H2, H1)
    w4, b4 = lin(ks[6], ks[7], H1, nb_movies)
    return dict(w1=w1, b1=b1, w2=w2, b2=b2, w3=w3, b3=b3, w4=w4, b4=b4)


def reference_forward(x, p):
    hp = jax.lax.Precision.HIGHEST

    def sig(z):
        return 1.0 / (1.0 + jnp.exp(-z))

    h = sig(jnp.dot(x, p["w1"], precision=hp) + p["b1"])
    h = sig(jnp.dot(h, p["w2"], precision=hp) + p["b2"])
    h = sig(jnp.dot(h, p["w3"], precision=hp) + p["b3"])
    return jnp.dot(h, p["w4"], precision=hp) + p["b4"]


if __name__ == "__main__":
    key = jax.random.PRNGKey(0)
    kx, kp = jax.random.split(key)

    # Small synthetic stand-in for the dataset-derived nb_movies. Both batch and
    # nb_movies are deliberately NOT multiples of the tile sizes to exercise the
    # padding + grid path (b_pad=64 -> 4 grid steps of 16 rows, m_pad=256).
    nb_movies = 200
    batch = 50

    x = jax.random.uniform(kx, (batch, nb_movies), jnp.float32, 0.0, 5.0)
    params = init_params(kp, nb_movies)

    out = sae_forward(x, params, batch_tile=16)
    out = jax.block_until_ready(out)

    ref = reference_forward(x, params)
    assert out.shape == (batch, nb_movies)
    max_err = float(jnp.max(jnp.abs(out - ref)))
    assert jnp.allclose(out, ref, atol=1e-5, rtol=1e-5), f"mismatch: {max_err}"
    print("KERNEL_OK")
</pallas_src>

<mosaic_0001>
module attributes {stable_mosaic.version = 11 : i64} {
  func.func @sae_kernel(%arg0: i32, %arg1: memref<16x256xf32, #tpu.memory_space<vmem>>, %arg2: memref<256x64xf32, #tpu.memory_space<vmem>>, %arg3: memref<1x64xf32, #tpu.memory_space<vmem>>, %arg4: memref<64x64xf32, #tpu.memory_space<vmem>>, %arg5: memref<1x64xf32, #tpu.memory_space<vmem>>, %arg6: memref<64x64xf32, #tpu.memory_space<vmem>>, %arg7: memref<1x64xf32, #tpu.memory_space<vmem>>, %arg8: memref<64x256xf32, #tpu.memory_space<vmem>>, %arg9: memref<1x256xf32, #tpu.memory_space<vmem>>, %arg10: memref<16x256xf32, #tpu.memory_space<vmem>>) attributes {dimension_semantics = [#tpu.dimension_semantics<parallel>], iteration_bounds = array<i64: 4>, scalar_prefetch = 0 : i64, scratch_operands = 0 : i64, tpu.core_type = #tpu.core_type<tc>, window_params = [{transform_indices = @transform_0, window_bounds = array<i64: 16, 256>}, {pipeline_mode = #tpu.pipeline_mode<synchronous>, transform_indices = @transform_1, window_bounds = array<i64: 256, 64>}, {pipeline_mode = #tpu.pipeline_mode<synchronous>, transform_indices = @transform_2, window_bounds = array<i64: 1, 64>}, {pipeline_mode = #tpu.pipeline_mode<synchronous>, transform_indices = @transform_3, window_bounds = array<i64: 64, 64>}, {pipeline_mode = #tpu.pipeline_mode<synchronous>, transform_indices = @transform_4, window_bounds = array<i64: 1, 64>}, {pipeline_mode = #tpu.pipeline_mode<synchronous>, transform_indices = @transform_5, window_bounds = array<i64: 64, 64>}, {pipeline_mode = #tpu.pipeline_mode<synchronous>, transform_indices = @transform_6, window_bounds = array<i64: 1, 64>}, {pipeline_mode = #tpu.pipeline_mode<synchronous>, transform_indices = @transform_7, window_bounds = array<i64: 64, 256>}, {pipeline_mode = #tpu.pipeline_mode<synchronous>, transform_indices = @transform_8, window_bounds = array<i64: 1, 256>}, {transform_indices = @transform_9, window_bounds = array<i64: 16, 256>}]} {
    %c0 = arith.constant 0 : index
    %c0_0 = arith.constant 0 : index
    %0 = vector.load %arg1[%c0, %c0_0] : memref<16x256xf32, #tpu.memory_space<vmem>>, vector<16x256xf32>
    %c0_1 = arith.constant 0 : index
    %c0_2 = arith.constant 0 : index
    %1 = vector.load %arg2[%c0_1, %c0_2] : memref<256x64xf32, #tpu.memory_space<vmem>>, vector<256x64xf32>
    %cst = arith.constant dense<0.000000e+00> : vector<16x64xf32>
    %2 = tpu.matmul %0, %1, %cst {dimension_numbers = #tpu.dot_dimension_numbers<[1], [0], [0], [1], [0, 0, 1, 1], [], []>} : vector<16x256xf32>, vector<256x64xf32>, vector<16x64xf32> -> vector<16x64xf32>
    %c0_3 = arith.constant 0 : index
    %c0_4 = arith.constant 0 : index
    %3 = vector.load %arg3[%c0_3, %c0_4] : memref<1x64xf32, #tpu.memory_space<vmem>>, vector<1x64xf32>
    %4 = vector.broadcast %3 : vector<1x64xf32> to vector<16x64xf32>
    %5 = arith.addf %2, %4 : vector<16x64xf32>
    %cst_5 = arith.constant 0.000000e+00 : f32
    %6 = vector.broadcast %cst_5 : f32 to vector<16x64xf32>
    %7 = arith.subf %6, %5 : vector<16x64xf32>
    %8 = math.exp %7 : vector<16x64xf32>
    %cst_6 = arith.constant 1.000000e+00 : f32
    %9 = vector.broadcast %cst_6 : f32 to vector<16x64xf32>
    %10 = arith.addf %9, %8 : vector<16x64xf32>
    %11 = tpu.reciprocal %10 : vector<16x64xf32> -> vector<16x64xf32>
    %c0_7 = arith.constant 0 : index
    %c0_8 = arith.constant 0 : index
    %12 = vector.load %arg4[%c0_7, %c0_8] : memref<64x64xf32, #tpu.memory_space<vmem>>, vector<64x64xf32>
    %cst_9 = arith.constant dense<0.000000e+00> : vector<16x64xf32>
    %13 = tpu.matmul %11, %12, %cst_9 {dimension_numbers = #tpu.dot_dimension_numbers<[1], [0], [0], [1], [0, 0, 1, 1], [], []>} : vector<16x64xf32>, vector<64x64xf32>, vector<16x64xf32> -> vector<16x64xf32>
    %c0_10 = arith.constant 0 : index
    %c0_11 = arith.constant 0 : index
    %14 = vector.load %arg5[%c0_10, %c0_11] : memref<1x64xf32, #tpu.memory_space<vmem>>, vector<1x64xf32>
    %15 = vector.broadcast %14 : vector<1x64xf32> to vector<16x64xf32>
    %16 = arith.addf %13, %15 : vector<16x64xf32>
    %cst_12 = arith.constant 0.000000e+00 : f32
    %17 = vector.broadcast %cst_12 : f32 to vector<16x64xf32>
    %18 = arith.subf %17, %16 : vector<16x64xf32>
    %19 = math.exp %18 : vector<16x64xf32>
    %cst_13 = arith.constant 1.000000e+00 : f32
    %20 = vector.broadcast %cst_13 : f32 to vector<16x64xf32>
    %21 = arith.addf %20, %19 : vector<16x64xf32>
    %22 = tpu.reciprocal %21 : vector<16x64xf32> -> vector<16x64xf32>
    %c0_14 = arith.constant 0 : index
    %c0_15 = arith.constant 0 : index
    %23 = vector.load %arg6[%c0_14, %c0_15] : memref<64x64xf32, #tpu.memory_space<vmem>>, vector<64x64xf32>
    %cst_16 = arith.constant dense<0.000000e+00> : vector<16x64xf32>
    %24 = tpu.matmul %22, %23, %cst_16 {dimension_numbers = #tpu.dot_dimension_numbers<[1], [0], [0], [1], [0, 0, 1, 1], [], []>} : vector<16x64xf32>, vector<64x64xf32>, vector<16x64xf32> -> vector<16x64xf32>
    %c0_17 = arith.constant 0 : index
    %c0_18 = arith.constant 0 : index
    %25 = vector.load %arg7[%c0_17, %c0_18] : memref<1x64xf32, #tpu.memory_space<vmem>>, vector<1x64xf32>
    %26 = vector.broadcast %25 : vector<1x64xf32> to vector<16x64xf32>
    %27 = arith.addf %24, %26 : vector<16x64xf32>
    %cst_19 = arith.constant 0.000000e+00 : f32
    %28 = vector.broadcast %cst_19 : f32 to vector<16x64xf32>
    %29 = arith.subf %28, %27 : vector<16x64xf32>
    %30 = math.exp %29 : vector<16x64xf32>
    %cst_20 = arith.constant 1.000000e+00 : f32
    %31 = vector.broadcast %cst_20 : f32 to vector<16x64xf32>
    %32 = arith.addf %31, %30 : vector<16x64xf32>
    %33 = tpu.reciprocal %32 : vector<16x64xf32> -> vector<16x64xf32>
    %c0_21 = arith.constant 0 : index
    %c0_22 = arith.constant 0 : index
    %34 = vector.load %arg8[%c0_21, %c0_22] : memref<64x256xf32, #tpu.memory_space<vmem>>, vector<64x256xf32>
    %cst_23 = arith.constant dense<0.000000e+00> : vector<16x256xf32>
    %35 = tpu.matmul %33, %34, %cst_23 {dimension_numbers = #tpu.dot_dimension_numbers<[1], [0], [0], [1], [0, 0, 1, 1], [], []>} : vector<16x64xf32>, vector<64x256xf32>, vector<16x256xf32> -> vector<16x256xf32>
    %c0_24 = arith.constant 0 : index
    %c0_25 = arith.constant 0 : index
    %36 = vector.load %arg9[%c0_24, %c0_25] : memref<1x256xf32, #tpu.memory_space<vmem>>, vector<1x256xf32>
    %37 = vector.broadcast %36 : vector<1x256xf32> to vector<16x256xf32>
    %38 = arith.addf %35, %37 : vector<16x256xf32>
    %c0_26 = arith.constant 0 : index
    %c0_27 = arith.constant 0 : index
    %39 = vector.load %arg10[%c0_26, %c0_27] : memref<16x256xf32, #tpu.memory_space<vmem>>, vector<16x256xf32>
    tpu.vector_store %arg10[%c0_26, %c0_27], %38 {strides = array<i32>} : memref<16x256xf32, #tpu.memory_space<vmem>>, vector<16x256xf32>,
    return
  }
  func.func @transform_0(%arg0: i32) -> (i32, i32) {
    %c0_i32 = arith.constant 0 : i32
    %c0_i32_0 = arith.constant 0 : i32
    return %arg0, %c0_i32 : i32, i32
  }
  func.func @transform_1(%arg0: i32) -> (i32, i32) {
    %c0_i32 = arith.constant 0 : i32
    %c0_i32_0 = arith.constant 0 : i32
    %c0_i32_1 = arith.constant 0 : i32
    return %c0_i32, %c0_i32_0 : i32, i32
  }
  func.func @transform_2(%arg0: i32) -> (i32, i32) {
    %c0_i32 = arith.constant 0 : i32
    %c0_i32_0 = arith.constant 0 : i32
    %c0_i32_1 = arith.constant 0 : i32
    return %c0_i32, %c0_i32_0 : i32, i32
  }
  func.func @transform_3(%arg0: i32) -> (i32, i32) {
    %c0_i32 = arith.constant 0 : i32
    %c0_i32_0 = arith.constant 0 : i32
    %c0_i32_1 = arith.constant 0 : i32
    return %c0_i32, %c0_i32_0 : i32, i32
  }
  func.func @transform_4(%arg0: i32) -> (i32, i32) {
    %c0_i32 = arith.constant 0 : i32
    %c0_i32_0 = arith.constant 0 : i32
    %c0_i32_1 = arith.constant 0 : i32
    return %c0_i32, %c0_i32_0 : i32, i32
  }
  func.func @transform_5(%arg0: i32) -> (i32, i32) {
    %c0_i32 = arith.constant 0 : i32
    %c0_i32_0 = arith.constant 0 : i32
    %c0_i32_1 = arith.constant 0 : i32
    return %c0_i32, %c0_i32_0 : i32, i32
  }
  func.func @transform_6(%arg0: i32) -> (i32, i32) {
    %c0_i32 = arith.constant 0 : i32
    %c0_i32_0 = arith.constant 0 : i32
    %c0_i32_1 = arith.constant 0 : i32
    return %c0_i32, %c0_i32_0 : i32, i32
  }
  func.func @transform_7(%arg0: i32) -> (i32, i32) {
    %c0_i32 = arith.constant 0 : i32
    %c0_i32_0 = arith.constant 0 : i32
    %c0_i32_1 = arith.constant 0 : i32
    return %c0_i32, %c0_i32_0 : i32, i32
  }
  func.func @transform_8(%arg0: i32) -> (i32, i32) {
    %c0_i32 = arith.constant 0 : i32
    %c0_i32_0 = arith.constant 0 : i32
    %c0_i32_1 = arith.constant 0 : i32
    return %c0_i32, %c0_i32_0 : i32, i32
  }
  func.func @transform_9(%arg0: i32) -> (i32, i32) {
    %c0_i32 = arith.constant 0 : i32
    %c0_i32_0 = arith.constant 0 : i32
    return %arg0, %c0_i32 : i32, i32
  }
}

</mosaic_0001>

<llo_original>
// kernel: tpu_custom_call.1
$region0: #{tpu_custom_call.1}
  #allocation0 [shape = 'u32[]', space=smem, size = 0x4, offset = 0x4, fixed_abs, tag = 'smem constant byte address 0x4 - core index']
  #allocation1 [shape = 'u32[144,128]{1,0:T(1,128)}', space=vmem, size = 0x12000, scoped, tag = 'internal scratch']
  %s0 = inlined_call_operand.vmem [shape: f32[64,256], index: 0, kind: input, shape index: {}]
  %s1 = inlined_call_operand.vmem [shape: f32[256,64], index: 1, kind: input, shape index: {}]
  %s2 = inlined_call_operand.hbm [shape: f32[1,64], index: 2, kind: input, shape index: {}]
  %s3 = inlined_call_operand.vmem [shape: f32[64,64], index: 3, kind: input, shape index: {}]
  %s4 = inlined_call_operand.vmem [shape: f32[1,64], index: 4, kind: input, shape index: {}]
  %s5 = inlined_call_operand.vmem [shape: f32[64,64], index: 5, kind: input, shape index: {}]
  %s6 = inlined_call_operand.vmem [shape: f32[1,64], index: 6, kind: input, shape index: {}]
  %s7 = inlined_call_operand.vmem [shape: f32[64,256], index: 7, kind: input, shape index: {}]
  %s8 = inlined_call_operand.vmem [shape: f32[1,256], index: 8, kind: input, shape index: {}]
  %s9 = inlined_call_operand.hbm [shape: f32[64,256], index: 9, kind: output, shape index: {}]
  %s10 = sld [smem:[#allocation0]]
  $region73: #{tpu_custom_call.1} parent=0
    _
  %s12 = ssub.s32 1, %s10
  %s13 = scalar_select 0, %s12, %s10
  $region1: #{tpu_custom_call.1} parent=0
    #allocation2 [shape = 'u8[512]{0}', space=vmem, size = 0x400, scoped, tag = 'input window, operand 2, single buffered']
    #allocation3 [shape = 's32[2]{0}', space=sflag, size = 0x8, scoped, tag = 'scoped memory for tpu_custom_call.1']
    #allocation4 [shape = 's32[2]{0}', space=sflag, size = 0x8, scoped, tag = 'scoped memory for tpu_custom_call.1']
    #allocation5 [shape = 'u8[32768]{0}', space=vmem, size = 0x8000, scoped, tag = 'output window, operand 0']
    %14 = vsyncpa [#allocation3], 0
    %15 = vsyncpa [#allocation4], 0
    %s16 = scalar_lea.sflag [#allocation4], 1
    %17 = vsyncpa %s16, 0
    loop: start=0, step=1, limit=6
    $region2: #{tpu_custom_call.1} parent=1 // loop_pre_header
      _
    $region3: #{tpu_custom_call.1} parent=1 // loop_header
      %s19 = sphi 0, %s23
      %p20 = scmp.ge.s32.totalorder %s19, 6
      %s29 = sphi 0, %s31
      %s32 = sphi 0, %s29
      %s33 = sphi 0, %s32
      %s49 = sphi 0, %s33
      %s53 = sphi 0, %s53
      %s55 = sphi 0, %s53
      %s56 = sphi 0, %s55
      %s70 = sphi 0, %s56
      %s74 = sphi 0, %s74
      %s76 = sphi 0, %s74
      %s77 = sphi 0, %s76
      %s91 = sphi 0, %s77
      %s95 = sphi 0, %s95
      %s97 = sphi 0, %s95
      %s98 = sphi 0, %s97
      %s112 = sphi 0, %s98
      %s116 = sphi 0, %s116
      %s118 = sphi 0, %s116
      %s119 = sphi 0, %s118
      %s133 = sphi 0, %s119
      %s137 = sphi 0, %s137
      %s139 = sphi 0, %s137
      %s140 = sphi 0, %s139
      %s154 = sphi 0, %s140
      %s158 = sphi 0, %s158
      %s160 = sphi 0, %s158
      %s161 = sphi 0, %s160
      %s175 = sphi 0, %s161
      %s179 = sphi 0, %s179
      %s181 = sphi 0, %s179
      %s182 = sphi 0, %s181
      %s196 = sphi 0, %s182
      %s200 = sphi 0, %s200
      %s202 = sphi 0, %s200
      %s203 = sphi 0, %s202
      %s217 = sphi 0, %s203
      %s223 = sphi 0, %s225
      %s226 = sphi 0, %s223
      %s227 = sphi 0, %s226
      %s243 = sphi 0, %s227
    $region4: #{tpu_custom_call.1} parent=1 // loop_header_branch
      %22 = sbr.rel (%p20) target = $region8
    $region5: #{tpu_custom_call.1} parent=1 // loop_body
      %s24 = ssub.s32 %s19, 1
      %s25 = ssub.s32 %s19, 2
      %s26 = sadd.s32 %s19, 1
      %s27 = ssub.s32 %s19, %s26
      %p28 = scmp.eq.s32.totalorder %s27, 0
      %s30 = sadd.s32 %s29, 1
      %s31 = scalar_select %p28, %s29, %s30
      %p34 = pneg %p28
      %p35 = scmp.eq.s32.totalorder %s19, 3
      %p36 = por %p34, %p35
      %p37 = scmp.ne.s32.totalorder %s29, %s32
      %p38 = scmp.eq.s32.totalorder %s19, 0
      %p39 = por %p37, %p38
      %p40 = scmp.ne.s32.totalorder %s29, %s32
      %p41 = scmp.eq.s32.totalorder %s24, 3
      %p42 = por %p40, %p41
      %p43 = scmp.ne.s32.totalorder %s32, %s33
      %p44 = scmp.eq.s32.totalorder %s24, 0
      %p45 = por %p43, %p44
      %p46 = scmp.ne.s32.totalorder %s32, %s33
      %p47 = scmp.eq.s32.totalorder %s25, 3
      %p48 = por %p46, %p47
      %p50 = scmp.ne.s32.totalorder %s33, %s49
      %p51 = scmp.eq.s32.totalorder %s25, 0
      %p52 = por %p50, %p51
      %s54 = sadd.s32 %s53, 1
      %p57 = scmp.eq.s32.totalorder %s19, 3
      %p58 = scmp.ne.s32.totalorder %s53, %s55
      %p59 = scmp.eq.s32.totalorder %s19, 0
      %p60 = por %p58, %p59
      %p61 = scmp.ne.s32.totalorder %s53, %s55
      %p62 = scmp.eq.s32.totalorder %s24, 3
      %p63 = por %p61, %p62
      %p64 = scmp.ne.s32.totalorder %s55, %s56
      %p65 = scmp.eq.s32.totalorder %s24, 0
      %p66 = por %p64, %p65
      %p67 = scmp.ne.s32.totalorder %s55, %s56
      %p68 = scmp.eq.s32.totalorder %s25, 3
      %p69 = por %p67, %p68
      %p71 = scmp.ne.s32.totalorder %s56, %s70
      %p72 = scmp.eq.s32.totalorder %s25, 0
      %p73 = por %p71, %p72
      %s75 = sadd.s32 %s74, 1
      %p78 = scmp.eq.s32.totalorder %s19, 3
      %p79 = scmp.ne.s32.totalorder %s74, %s76
      %p80 = scmp.eq.s32.totalorder %s19, 0
      %p81 = por %p79, %p80
      %p82 = scmp.ne.s32.totalorder %s74, %s76
      %p83 = scmp.eq.s32.totalorder %s24, 3
      %p84 = por %p82, %p83
      %p85 = scmp.ne.s32.totalorder %s76, %s77
      %p86 = scmp.eq.s32.totalorder %s24, 0
      %p87 = por %p85, %p86
      %p88 = scmp.ne.s32.totalorder %s76, %s77
      %p89 = scmp.eq.s32.totalorder %s25, 3
      %p90 = por %p88, %p89
      %p92 = scmp.ne.s32.totalorder %s77, %s91
      %p93 = scmp.eq.s32.totalorder %s25, 0
      %p94 = por %p92, %p93
      %s96 = sadd.s32 %s95, 1
      %p99 = scmp.eq.s32.totalorder %s19, 3
      %p100 = scmp.ne.s32.totalorder %s95, %s97
      %p101 = scmp.eq.s32.totalorder %s19, 0
      %p102 = por %p100, %p101
      %p103 = scmp.ne.s32.totalorder %s95, %s97
      %p104 = scmp.eq.s32.totalorder %s24, 3
      %p105 = por %p103, %p104
      %p106 = scmp.ne.s32.totalorder %s97, %s98
      %p107 = scmp.eq.s32.totalorder %s24, 0
      %p108 = por %p106, %p107
      %p109 = scmp.ne.s32.totalorder %s97, %s98
      %p110 = scmp.eq.s32.totalorder %s25, 3
      %p111 = por %p109, %p110
      %p113 = scmp.ne.s32.totalorder %s98, %s112
      %p114 = scmp.eq.s32.totalorder %s25, 0
      %p115 = por %p113, %p114
      %s117 = sadd.s32 %s116, 1
      %p120 = scmp.eq.s32.totalorder %s19, 3
      %p121 = scmp.ne.s32.totalorder %s116, %s118
      %p122 = scmp.eq.s32.totalorder %s19, 0
      %p123 = por %p121, %p122
      %p124 = scmp.ne.s32.totalorder %s116, %s118
      %p125 = scmp.eq.s32.totalorder %s24, 3
      %p126 = por %p124, %p125
      %p127 = scmp.ne.s32.totalorder %s118, %s119
      %p128 = scmp.eq.s32.totalorder %s24, 0
      %p129 = por %p127, %p128
      %p130 = scmp.ne.s32.totalorder %s118, %s119
      %p131 = scmp.eq.s32.totalorder %s25, 3
      %p132 = por %p130, %p131
      %p134 = scmp.ne.s32.totalorder %s119, %s133
      %p135 = scmp.eq.s32.totalorder %s25, 0
      %p136 = por %p134, %p135
      %s138 = sadd.s32 %s137, 1
      %p141 = scmp.eq.s32.totalorder %s19, 3
      %p142 = scmp.ne.s32.totalorder %s137, %s139
      %p143 = scmp.eq.s32.totalorder %s19, 0
      %p144 = por %p142, %p143
      %p145 = scmp.ne.s32.totalorder %s137, %s139
      %p146 = scmp.eq.s32.totalorder %s24, 3
      %p147 = por %p145, %p146
      %p148 = scmp.ne.s32.totalorder %s139, %s140
      %p149 = scmp.eq.s32.totalorder %s24, 0
      %p150 = por %p148, %p149
      %p151 = scmp.ne.s32.totalorder %s139, %s140
      %p152 = scmp.eq.s32.totalorder %s25, 3
      %p153 = por %p151, %p152
      %p155 = scmp.ne.s32.totalorder %s140, %s154
      %p156 = scmp.eq.s32.totalorder %s25, 0
      %p157 = por %p155, %p156
      %s159 = sadd.s32 %s158, 1
      %p162 = scmp.eq.s32.totalorder %s19, 3
      %p163 = scmp.ne.s32.totalorder %s158, %s160
      %p164 = scmp.eq.s32.totalorder %s19, 0
      %p165 = por %p163, %p164
      %p166 = scmp.ne.s32.totalorder %s158, %s160
      %p167 = scmp.eq.s32.totalorder %s24, 3
      %p168 = por %p166, %p167
      %p169 = scmp.ne.s32.totalorder %s160, %s161
      %p170 = scmp.eq.s32.totalorder %s24, 0
      %p171 = por %p169, %p170
      %p172 = scmp.ne.s32.totalorder %s160, %s161
      %p173 = scmp.eq.s32.totalorder %s25, 3
      %p174 = por %p172, %p173
      %p176 = scmp.ne.s32.totalorder %s161, %s175
      %p177 = scmp.eq.s32.totalorder %s25, 0
      %p178 = por %p176, %p177
      %s180 = sadd.s32 %s179, 1
      %p183 = scmp.eq.s32.totalorder %s19, 3
      %p184 = scmp.ne.s32.totalorder %s179, %s181
      %p185 = scmp.eq.s32.totalorder %s19, 0
      %p186 = por %p184, %p185
      %p187 = scmp.ne.s32.totalorder %s179, %s181
      %p188 = scmp.eq.s32.totalorder %s24, 3
      %p189 = por %p187, %p188
      %p190 = scmp.ne.s32.totalorder %s181, %s182
      %p191 = scmp.eq.s32.totalorder %s24, 0
      %p192 = por %p190, %p191
      %p193 = scmp.ne.s32.totalorder %s181, %s182
      %p194 = scmp.eq.s32.totalorder %s25, 3
      %p195 = por %p193, %p194
      %p197 = scmp.ne.s32.totalorder %s182, %s196
      %p198 = scmp.eq.s32.totalorder %s25, 0
      %p199 = por %p197, %p198
      %s201 = sadd.s32 %s200, 1
      %p204 = scmp.eq.s32.totalorder %s19, 3
      %p205 = scmp.ne.s32.totalorder %s200, %s202
      %p206 = scmp.eq.s32.totalorder %s19, 0
      %p207 = por %p205, %p206
      %p208 = scmp.ne.s32.totalorder %s200, %s202
      %p209 = scmp.eq.s32.totalorder %s24, 3
      %p210 = por %p208, %p209
      %p211 = scmp.ne.s32.totalorder %s202, %s203
      %p212 = scmp.eq.s32.totalorder %s24, 0
      %p213 = por %p211, %p212
      %p214 = scmp.ne.s32.totalorder %s202, %s203
      %p215 = scmp.eq.s32.totalorder %s25, 3
      %p216 = por %p214, %p215
      %p218 = scmp.ne.s32.totalorder %s203, %s217
      %p219 = scmp.eq.s32.totalorder %s25, 0
      %p220 = por %p218, %p219
      %s221 = ssub.s32 %s19, %s26
      %p222 = scmp.eq.s32.totalorder %s221, 0
      %s224 = sadd.s32 %s223, 1
      %s225 = scalar_select %p222, %s223, %s224
      %p228 = pneg %p222
      %p229 = scmp.eq.s32.totalorder %s19, 3
      %p230 = por %p228, %p229
      %p231 = scmp.ne.s32.totalorder %s223, %s226
      %p232 = scmp.eq.s32.totalorder %s19, 0
      %p233 = por %p231, %p232
      %p234 = scmp.ne.s32.totalorder %s223, %s226
      %p235 = scmp.eq.s32.totalorder %s24, 3
      %p236 = por %p234, %p235
      %p237 = scmp.ne.s32.totalorder %s226, %s227
      %p238 = scmp.eq.s32.totalorder %s24, 0
      %p239 = por %p237, %p238
      %p240 = scmp.ne.s32.totalorder %s226, %s227
      %p241 = scmp.eq.s32.totalorder %s25, 3
      %p242 = por %p240, %p241
      %p244 = scmp.ne.s32.totalorder %s227, %s243
      %p245 = scmp.eq.s32.totalorder %s25, 0
      %p246 = por %p244, %p245
      %p247 = scmp.le.s32.totalorder 1, %s19
      %p248 = scmp.lt.s32.totalorder %s19, 5
      %p249 = pnand %p247, %p248
      %p250 = pneg %p249
      // Predicated region
      $region9: #{tpu_custom_call.1} parent=5 // pred_check
        _
      $region10: #{tpu_custom_call.1} parent=5 // pred_check_branch
        %252 = sbr.rel (%p249) target = $region12
      $region11: #{tpu_custom_call.1} parent=5 // pred_region
        %s253 = ssub.s32 %s19, 1
        // Predicated region
        $region13: #{tpu_custom_call.1} parent=11 // pred_check
          %p254 = pneg %p66
        $region14: #{tpu_custom_call.1} parent=11 // pred_check_branch
          %256 = sbr.rel (%p254) target = $region16
        $region15: #{tpu_custom_call.1} parent=11 // pred_region
          _
        $region16: #{tpu_custom_call.1} parent=11 // pred_fallthru
          _
        // Predicated region
        $region17: #{tpu_custom_call.1} parent=11 // pred_check
          %p257 = pneg %p87
        $region18: #{tpu_custom_call.1} parent=11 // pred_check_branch
          %259 = sbr.rel (%p257) target = $region20
        $region19: #{tpu_custom_call.1} parent=11 // pred_region
          %s261 = ssub.s32 16, 16
          %262 = vsyncadd [#allocation3], %s261
          %s264 = sshll.u32 [#allocation2], 4
          %s265 = int_to_ptr.vmem [resolvable:$true] %s264
          %267 = dma.hbm_to_vmem [thread:$0]  %s2, 16, %s265, [#allocation3]
        $region20: #{tpu_custom_call.1} parent=11 // pred_fallthru
          _
        // Predicated region
        $region21: #{tpu_custom_call.1} parent=11 // pred_check
          %p268 = pneg %p108
        $region22: #{tpu_custom_call.1} parent=11 // pred_check_branch
          %270 = sbr.rel (%p268) target = $region24
        $region23: #{tpu_custom_call.1} parent=11 // pred_region
          _
        $region24: #{tpu_custom_call.1} parent=11 // pred_fallthru
          _
        // Predicated region
        $region25: #{tpu_custom_call.1} parent=11 // pred_check
          %p271 = pneg %p129
        $region26: #{tpu_custom_call.1} parent=11 // pred_check_branch
          %273 = sbr.rel (%p271) target = $region28
        $region27: #{tpu_custom_call.1} parent=11 // pred_region
          _
        $region28: #{tpu_custom_call.1} parent=11 // pred_fallthru
          _
        // Predicated region
        $region29: #{tpu_custom_call.1} parent=11 // pred_check
          %p274 = pneg %p150
        $region30: #{tpu_custom_call.1} parent=11 // pred_check_branch
          %276 = sbr.rel (%p274) target = $region32
        $region31: #{tpu_custom_call.1} parent=11 // pred_region
          _
        $region32: #{tpu_custom_call.1} parent=11 // pred_fallthru
          _
        // Predicated region
        $region33: #{tpu_custom_call.1} parent=11 // pred_check
          %p277 = pneg %p171
        $region34: #{tpu_custom_call.1} parent=11 // pred_check_branch
          %279 = sbr.rel (%p277) target = $region36
        $region35: #{tpu_custom_call.1} parent=11 // pred_region
          _
        $region36: #{tpu_custom_call.1} parent=11 // pred_fallthru
          _
        // Predicated region
        $region37: #{tpu_custom_call.1} parent=11 // pred_check
          %p280 = pneg %p192
        $region38: #{tpu_custom_call.1} parent=11 // pred_check_branch
          %282 = sbr.rel (%p280) target = $region40
        $region39: #{tpu_custom_call.1} parent=11 // pred_region
          _
        $region40: #{tpu_custom_call.1} parent=11 // pred_fallthru
          _
        // Predicated region
        $region41: #{tpu_custom_call.1} parent=11 // pred_check
          %p283 = pneg %p213
        $region42: #{tpu_custom_call.1} parent=11 // pred_check_branch
          %285 = sbr.rel (%p283) target = $region44
        $region43: #{tpu_custom_call.1} parent=11 // pred_region
          _
        $region44: #{tpu_custom_call.1} parent=11 // pred_fallthru
          _
      $region12: #{tpu_custom_call.1} parent=5 // pred_fallthru
        _
      %p286 = scmp.lt.s32.totalorder %s19, 4
      // Predicated region
      $region45: #{tpu_custom_call.1} parent=5 // pred_check
        %p287 = pneg %p286
      $region46: #{tpu_custom_call.1} parent=5 // pred_check_branch
        %289 = sbr.rel (%p287) target = $region48
      $region47: #{tpu_custom_call.1} parent=5 // pred_region
        // Predicated region
        $region49: #{tpu_custom_call.1} parent=47 // pred_check
          %p290 = pneg %p39
        $region50: #{tpu_custom_call.1} parent=47 // pred_check_branch
          %292 = sbr.rel (%p290) target = $region52
        $region51: #{tpu_custom_call.1} parent=47 // pred_region
          %s293 = smul.u32 2, %s19
          %p294 = scmp.lt.s32.totalorder %s293, 7
          %s295 = scalar_select %p294, %s293, 7
          %s296 = smul.addr %s295, 2
          %s297 = smul.addr %s296, 8
          %s298 = scalar_lea.vmem %s0, %s297
          %s299 = smul.u32 2, %s19
        $region52: #{tpu_custom_call.1} parent=47 // pred_fallthru
          _
      $region48: #{tpu_custom_call.1} parent=5 // pred_fallthru
        _
      %p300 = scmp.le.s32.totalorder 1, %s19
      %p301 = scmp.lt.s32.totalorder %s19, 5
      %p302 = pnand %p300, %p301
      %p303 = pneg %p302
      // Predicated region
      $region53: #{tpu_custom_call.1} parent=5 // pred_check
        _
      $region54: #{tpu_custom_call.1} parent=5 // pred_check_branch
        %305 = sbr.rel (%p302) target = $region56
      $region55: #{tpu_custom_call.1} parent=5 // pred_region
        %s306 = ssub.s32 %s19, 1
        // Predicated region
        $region57: #{tpu_custom_call.1} parent=55 // pred_check
          %p307 = pneg %p87
        $region58: #{tpu_custom_call.1} parent=55 // pred_check_branch
          %309 = sbr.rel (%p307) target = $region60
        $region59: #{tpu_custom_call.1} parent=55 // pred_region
          %310 = dma.done [#allocation3], 16
        $region60: #{tpu_custom_call.1} parent=55 // pred_fallthru
          _
        %s311 = smul.u32 2, %s24
        %p312 = scmp.lt.s32.totalorder %s311, 7
        %s313 = scalar_select %p312, %s311, 7
        %s314 = smul.addr %s313, 2
        %s315 = smul.addr %s314, 8
        %s316 = scalar_lea.vmem %s0, %s315
        %p317 = pneg %p45
        %p318 = pneg %p42
        %p319 = pneg %p66
        %p320 = pneg %p63
        %p321 = pneg %p87
        %p322 = pneg %p84
        %p323 = pneg %p108
        %p324 = pneg %p105
        %p325 = pneg %p129
        %p326 = pneg %p126
        %p327 = pneg %p150
        %p328 = pneg %p147
        %p329 = pneg %p171
        %p330 = pneg %p168
        %p331 = pneg %p192
        %p332 = pneg %p189
        %p333 = pneg %p213
        %p334 = pneg %p210
        %p335 = pneg %p239
        %p336 = pneg %p236
        %s337 = sand.u32 %s226, 1
        %s338 = scalar_lea.sflag [#allocation4], %s337
        %s339 = sand.u32 %s226, 1
        %s340 = smul.addr %s339, 32
        %s341 = scalar_lea.vmem [#allocation5], %s340
        %s342 = smul.u32 2, %s24
        %p343 = scmp.lt.s32.totalorder %s342, 7
        %s344 = scalar_select %p343, %s342, 7
        %s345 = smul.addr %s344, 2
        %s346 = smul.addr %s345, 8
        %s347 = scalar_lea.vmem %s0, %s346
        %s348 = smul.u32 2, %s24
        %s349 = smul.u32 2, %s24
        %v350 = vld [vmem:[%s347] sm:$0xff]
        %v351 = vld [vmem:[%s347 + $0x8] sm:$0xff]
        %v352 = vld [vmem:[%s347 + $0x10] sm:$0xff]
        %v353 = vld [vmem:[%s347 + $0x18] sm:$0xff]
        %v354 = vld [vmem:[%s1] sm:$0xff]
        %v355 = vld [vmem:[%s1 + $0x8] sm:$0xff]
        %v356 = vld [vmem:[%s1 + $0x10] sm:$0xff]
        %v357 = vld [vmem:[%s1 + $0x18] sm:$0xff]
        %v358 = vld [vmem:[%s1 + $0x20] sm:$0xff]
        %v359 = vld [vmem:[%s1 + $0x28] sm:$0xff]
        %v360 = vld [vmem:[%s1 + $0x30] sm:$0xff]
        %v361 = vld [vmem:[%s1 + $0x38] sm:$0xff]
        %v362 = vld [vmem:[%s1 + $0x40] sm:$0xff]
        %v363 = vld [vmem:[%s1 + $0x48] sm:$0xff]
        %v364 = vld [vmem:[%s1 + $0x50] sm:$0xff]
        %v365 = vld [vmem:[%s1 + $0x58] sm:$0xff]
        %v366 = vld [vmem:[%s1 + $0x60] sm:$0xff]
        %v367 = vld [vmem:[%s1 + $0x68] sm:$0xff]
        %v368 = vld [vmem:[%s1 + $0x70] sm:$0xff]
        %v369 = vld [vmem:[%s1 + $0x78] sm:$0xff]
        %v370 = vld [vmem:[%s1 + $0x80] sm:$0xff]
        %v371 = vld [vmem:[%s1 + $0x88] sm:$0xff]
        %v372 = vld [vmem:[%s1 + $0x90] sm:$0xff]
        %v373 = vld [vmem:[%s1 + $0x98] sm:$0xff]
        %v374 = vld [vmem:[%s1 + $0xa0] sm:$0xff]
        %v375 = vld [vmem:[%s1 + $0xa8] sm:$0xff]
        %v376 = vld [vmem:[%s1 + $0xb0] sm:$0xff]
        %v377 = vld [vmem:[%s1 + $0xb8] sm:$0xff]
        %v378 = vld [vmem:[%s1 + $0xc0] sm:$0xff]
        %v379 = vld [vmem:[%s1 + $0xc8] sm:$0xff]
        %v380 = vld [vmem:[%s1 + $0xd0] sm:$0xff]
        %v381 = vld [vmem:[%s1 + $0xd8] sm:$0xff]
        %v382 = vld [vmem:[%s1 + $0xe0] sm:$0xff]
        %v383 = vld [vmem:[%s1 + $0xe8] sm:$0xff]
        %v384 = vld [vmem:[%s1 + $0xf0] sm:$0xff]
        %v385 = vld [vmem:[%s1 + $0xf8] sm:$0xff]
        %v386 = vld [vmem:[#allocation2] sm:$0x1]
        %v388 = vlaneseq
        %v389 = vshrl.u32 %v388, 7
        %v390 = vsub.s32 0, %v389
        %v391 = vrot.slane %v386, %v390
        %393 = vmatprep.subr.mxu0 0.0
        %394 = vmatpush1.msra.mxu0 %v369
        %395 = vmatprep.subr.mxu0 0.0
        %396 = vmatpush1.msra.mxu0 %v368
        %397 = vmatprep.subr.mxu0 0.0
        %398 = vmatpush1.msra.mxu0 %v367
        %399 = vmatprep.subr.mxu0 0.0
        %400 = vmatpush1.msra.mxu0 %v366
        %401 = vmatprep.subr.mxu0 0.0
        %402 = vmatpush1.msra.mxu0 %v365
        %403 = vmatprep.subr.mxu0 0.0
        %404 = vmatpush1.msra.mxu0 %v364
        %405 = vmatprep.subr.mxu0 0.0
        %406 = vmatpush1.msra.mxu0 %v363
        %407 = vmatprep.subr.mxu0 0.0
        %408 = vmatpush1.msra.mxu0 %v362
        %409 = vmatprep.subr.mxu0 0.0
        %410 = vmatpush1.msra.mxu0 %v361
        %411 = vmatprep.subr.mxu0 0.0
        %412 = vmatpush1.msra.mxu0 %v360
        %413 = vmatprep.subr.mxu0 0.0
        %414 = vmatpush1.msra.mxu0 %v359
        %415 = vmatprep.subr.mxu0 0.0
        %416 = vmatpush1.msra.mxu0 %v358
        %417 = vmatprep.subr.mxu0 0.0
        %418 = vmatpush1.msra.mxu0 %v357
        %419 = vmatprep.subr.mxu0 0.0
        %420 = vmatpush1.msra.mxu0 %v356
        %421 = vmatprep.subr.mxu0 0.0
        %422 = vmatpush1.msra.mxu0 %v355
        %423 = vmatprep.subr.mxu0 0.0
        %424 = vmatpush1.msra.mxu0 %v354
        %425 = vmatprep.subr.mxu0 0.0
        %426 = vmatpush2.msra.mxu0 %v385
        %427 = vmatprep.subr.mxu0 0.0
        %428 = vmatpush2.msra.mxu0 %v384
        %429 = vmatprep.subr.mxu0 0.0
        %430 = vmatpush2.msra.mxu0 %v383
        %431 = vmatprep.subr.mxu0 0.0
        %432 = vmatpush2.msra.mxu0 %v382
        %433 = vmatprep.subr.mxu0 0.0
        %434 = vmatpush2.msra.mxu0 %v381
        %435 = vmatprep.subr.mxu0 0.0
        %436 = vmatpush2.msra.mxu0 %v380
        %437 = vmatprep.subr.mxu0 0.0
        %438 = vmatpush2.msra.mxu0 %v379
        %439 = vmatprep.subr.mxu0 0.0
        %440 = vmatpush2.msra.mxu0 %v378
        %441 = vmatprep.subr.mxu0 0.0
        %442 = vmatpush2.msra.mxu0 %v377
        %443 = vmatprep.subr.mxu0 0.0
        %444 = vmatpush2.msra.mxu0 %v376
        %445 = vmatprep.subr.mxu0 0.0
        %446 = vmatpush2.msra.mxu0 %v375
        %447 = vmatprep.subr.mxu0 0.0
        %448 = vmatpush2.msra.mxu0 %v374
        %449 = vmatprep.subr.mxu0 0.0
        %450 = vmatpush2.msra.mxu0 %v373
        %451 = vmatprep.subr.mxu0 0.0
        %452 = vmatpush2.msra.mxu0 %v372
        %453 = vmatprep.subr.mxu0 0.0
        %454 = vmatpush2.msra.mxu0 %v371
        %455 = vmatprep.subr.mxu0 0.0
        %456 = vmatpush2.msra.mxu0 %v370
        %457 = vmatprep.mubr.f32.mxu0 %v351
        %458 = vmatmul.mubr.f32.gmra.mxu0 %v350
        %v459 = vpop.f32.mrf.mxu0
        %v460 = vadd.f32 %v391, %v459
        %v461 = vpop.f32.mrf.mxu0
        %462 = vmatprep.mubr.f32.mxu0 %v353
        %463 = vmatmul.mubr.f32.gmra.mxu0 %v352
        %v464 = vpop.f32.mrf.mxu0
        %v465 = vadd.f32 %v391, %v464
        %v466 = vpop.f32.mrf.mxu0
        %467 = vdwg.mxu0
        %v468 = vsub.f32 0.0, %v460
        %v469 = vsub.f32 0.0, %v465
        %v470 = vmul.f32 %v468, 1.442695
        %v471 = vpow.pop %v470
        %v472 = vmul.f32 %v469, 1.442695
        %v473 = vpow.pop %v472
        %v474 = vadd.f32 %v471, 1.0
        %v475 = vadd.f32 %v473, 1.0
        %v476 = vrcp.pop %v474
        %v477 = vrcp.pop %v475
        %v478 = vld [vmem:[%s3] sm:$0xff]
        %v479 = vld [vmem:[%s3 + $0x8] sm:$0xff]
        %v480 = vld [vmem:[%s3 + $0x10] sm:$0xff]
        %v481 = vld [vmem:[%s3 + $0x18] sm:$0xff]
        %v482 = vld [vmem:[%s3 + $0x20] sm:$0xff]
        %v483 = vld [vmem:[%s3 + $0x28] sm:$0xff]
        %v484 = vld [vmem:[%s3 + $0x30] sm:$0xff]
        %v485 = vld [vmem:[%s3 + $0x38] sm:$0xff]
        %v486 = vld [vmem:[%s4] sm:$0x1]
        %v488 = vlaneseq
        %v489 = vshrl.u32 %v488, 7
        %v490 = vsub.s32 0, %v489
        %v491 = vrot.slane %v486, %v490
        %vm493 = vcmask 523264
        %v495 = vsel %vm493, %v476, 0
        %v498 = vsel %vm493, %v477, 0
        %500 = vmatprep.subr.mxu0 0.0
        %501 = vmatpush1.msra.mxu0 0.0
        %502 = vmatprep.subr.mxu0 0.0
        %503 = vmatpush1.msra.mxu0 0.0
        %504 = vmatprep.subr.mxu0 0.0
        %505 = vmatpush1.msra.mxu0 0.0
        %506 = vmatprep.subr.mxu0 0.0
        %507 = vmatpush1.msra.mxu0 0.0
        %508 = vmatprep.subr.mxu0 0.0
        %509 = vmatpush1.msra.mxu0 0.0
        %510 = vmatprep.subr.mxu0 0.0
        %511 = vmatpush1.msra.mxu0 0.0
        %512 = vmatprep.subr.mxu0 0.0
        %513 = vmatpush1.msra.mxu0 0.0
        %514 = vmatprep.subr.mxu0 0.0
        %515 = vmatpush1.msra.mxu0 0.0
        %516 = vmatprep.subr.mxu0 0.0
        %517 = vmatpush1.msra.mxu0 %v485
        %518 = vmatprep.subr.mxu0 0.0
        %519 = vmatpush1.msra.mxu0 %v484
        %520 = vmatprep.subr.mxu0 0.0
        %521 = vmatpush1.msra.mxu0 %v483
        %522 = vmatprep.subr.mxu0 0.0
        %523 = vmatpush1.msra.mxu0 %v482
        %524 = vmatprep.subr.mxu0 0.0
        %525 = vmatpush1.msra.mxu0 %v481
        %526 = vmatprep.subr.mxu0 0.0
        %527 = vmatpush1.msra.mxu0 %v480
        %528 = vmatprep.subr.mxu0 0.0
        %529 = vmatpush1.msra.mxu0 %v479
        %530 = vmatprep.subr.mxu0 0.0
        %531 = vmatpush1.msra.mxu0 %v478
        %532 = vmatprep.subr.mxu0 0.0
        %533 = vmatpush2.msra.mxu0 0.0
        %534 = vmatprep.subr.mxu0 0.0
        %535 = vmatpush2.msra.mxu0 0.0
        %536 = vmatprep.subr.mxu0 0.0
        %537 = vmatpush2.msra.mxu0 0.0
        %538 = vmatprep.subr.mxu0 0.0
        %539 = vmatpush2.msra.mxu0 0.0
        %540 = vmatprep.subr.mxu0 0.0
        %541 = vmatpush2.msra.mxu0 0.0
        %542 = vmatprep.subr.mxu0 0.0
        %543 = vmatpush2.msra.mxu0 0.0
        %544 = vmatprep.subr.mxu0 0.0
        %545 = vmatpush2.msra.mxu0 0.0
        %546 = vmatprep.subr.mxu0 0.0
        %547 = vmatpush2.msra.mxu0 0.0
        %548 = vmatprep.subr.mxu0 0.0
        %549 = vmatpush2.msra.mxu0 0.0
        %550 = vmatprep.subr.mxu0 0.0
        %551 = vmatpush2.msra.mxu0 0.0
        %552 = vmatprep.subr.mxu0 0.0
        %553 = vmatpush2.msra.mxu0 0.0
        %554 = vmatprep.subr.mxu0 0.0
        %555 = vmatpush2.msra.mxu0 0.0
        %556 = vmatprep.subr.mxu0 0.0
        %557 = vmatpush2.msra.mxu0 0.0
        %558 = vmatprep.subr.mxu0 0.0
        %559 = vmatpush2.msra.mxu0 0.0
        %560 = vmatprep.subr.mxu0 0.0
        %561 = vmatpush2.msra.mxu0 0.0
        %562 = vmatprep.subr.mxu0 0.0
        %563 = vmatpush2.msra.mxu0 0.0
        %564 = vmatprep.mubr.f32.mxu0 0.0
        %565 = vmatmul.mubr.f32.gmra.mxu0 %v495
        %v566 = vpop.f32.mrf.mxu0
        %v567 = vadd.f32 %v491, %v566
        %v568 = vpop.f32.mrf.mxu0
        %569 = vmatprep.mubr.f32.mxu0 0.0
        %570 = vmatmul.mubr.f32.gmra.mxu0 %v498
        %v571 = vpop.f32.mrf.mxu0
        %v572 = vadd.f32 %v491, %v571
        %v573 = vpop.f32.mrf.mxu0
        %574 = vdwg.mxu0
        %v575 = vsub.f32 0.0, %v567
        %v576 = vsub.f32 0.0, %v572
        %v577 = vmul.f32 %v575, 1.442695
        %v578 = vpow.pop %v577
        %v579 = vmul.f32 %v576, 1.442695
        %v580 = vpow.pop %v579
        %v581 = vadd.f32 %v578, 1.0
        %v582 = vadd.f32 %v580, 1.0
        %v583 = vrcp.pop %v581
        %v584 = vrcp.pop %v582
        %v585 = vld [vmem:[%s5] sm:$0xff]
        %v586 = vld [vmem:[%s5 + $0x8] sm:$0xff]
        %v587 = vld [vmem:[%s5 + $0x10] sm:$0xff]
        %v588 = vld [vmem:[%s5 + $0x18] sm:$0xff]
        %v589 = vld [vmem:[%s5 + $0x20] sm:$0xff]
        %v590 = vld [vmem:[%s5 + $0x28] sm:$0xff]
        %v591 = vld [vmem:[%s5 + $0x30] sm:$0xff]
        %v592 = vld [vmem:[%s5 + $0x38] sm:$0xff]
        %v593 = vld [vmem:[%s6] sm:$0x1]
        %v595 = vlaneseq
        %v596 = vshrl.u32 %v595, 7
        %v597 = vsub.s32 0, %v596
        %v598 = vrot.slane %v593, %v597
        %v601 = vsel %vm493, %v583, 0
        %v604 = vsel %vm493, %v584, 0
        %606 = vmatprep.subr.mxu0 0.0
        %607 = vmatpush1.msra.mxu0 0.0
        %608 = vmatprep.subr.mxu0 0.0
        %609 = vmatpush1.msra.mxu0 0.0
        %610 = vmatprep.subr.mxu0 0.0
        %611 = vmatpush1.msra.mxu0 0.0
        %612 = vmatprep.subr.mxu0 0.0
        %613 = vmatpush1.msra.mxu0 0.0
        %614 = vmatprep.subr.mxu0 0.0
        %615 = vmatpush1.msra.mxu0 0.0
        %616 = vmatprep.subr.mxu0 0.0
        %617 = vmatpush1.msra.mxu0 0.0
        %618 = vmatprep.subr.mxu0 0.0
        %619 = vmatpush1.msra.mxu0 0.0
        %620 = vmatprep.subr.mxu0 0.0
        %621 = vmatpush1.msra.mxu0 0.0
        %622 = vmatprep.subr.mxu0 0.0
        %623 = vmatpush1.msra.mxu0 %v592
        %624 = vmatprep.subr.mxu0 0.0
        %625 = vmatpush1.msra.mxu0 %v591
        %626 = vmatprep.subr.mxu0 0.0
        %627 = vmatpush1.msra.mxu0 %v590
        %628 = vmatprep.subr.mxu0 0.0
        %629 = vmatpush1.msra.mxu0 %v589
        %630 = vmatprep.subr.mxu0 0.0
        %631 = vmatpush1.msra.mxu0 %v588
        %632 = vmatprep.subr.mxu0 0.0
        %633 = vmatpush1.msra.mxu0 %v587
        %634 = vmatprep.subr.mxu0 0.0
        %635 = vmatpush1.msra.mxu0 %v586
        %636 = vmatprep.subr.mxu0 0.0
        %637 = vmatpush1.msra.mxu0 %v585
        %638 = vmatprep.subr.mxu0 0.0
        %639 = vmatpush2.msra.mxu0 0.0
        %640 = vmatprep.subr.mxu0 0.0
        %641 = vmatpush2.msra.mxu0 0.0
        %642 = vmatprep.subr.mxu0 0.0
        %643 = vmatpush2.msra.mxu0 0.0
        %644 = vmatprep.subr.mxu0 0.0
        %645 = vmatpush2.msra.mxu0 0.0
        %646 = vmatprep.subr.mxu0 0.0
        %647 = vmatpush2.msra.mxu0 0.0
        %648 = vmatprep.subr.mxu0 0.0
        %649 = vmatpush2.msra.mxu0 0.0
        %650 = vmatprep.subr.mxu0 0.0
        %651 = vmatpush2.msra.mxu0 0.0
        %652 = vmatprep.subr.mxu0 0.0
        %653 = vmatpush2.msra.mxu0 0.0
        %654 = vmatprep.subr.mxu0 0.0
        %655 = vmatpush2.msra.mxu0 0.0
        %656 = vmatprep.subr.mxu0 0.0
        %657 = vmatpush2.msra.mxu0 0.0
        %658 = vmatprep.subr.mxu0 0.0
        %659 = vmatpush2.msra.mxu0 0.0
        %660 = vmatprep.subr.mxu0 0.0
        %661 = vmatpush2.msra.mxu0 0.0
        %662 = vmatprep.subr.mxu0 0.0
        %663 = vmatpush2.msra.mxu0 0.0
        %664 = vmatprep.subr.mxu0 0.0
        %665 = vmatpush2.msra.mxu0 0.0
        %666 = vmatprep.subr.mxu0 0.0
        %667 = vmatpush2.msra.mxu0 0.0
        %668 = vmatprep.subr.mxu0 0.0
        %669 = vmatpush2.msra.mxu0 0.0
        %670 = vmatprep.mubr.f32.mxu0 0.0
        %671 = vmatmul.mubr.f32.gmra.mxu0 %v601
        %v672 = vpop.f32.mrf.mxu0
        %v673 = vadd.f32 %v598, %v672
        %v674 = vpop.f32.mrf.mxu0
        %675 = vmatprep.mubr.f32.mxu0 0.0
        %676 = vmatmul.mubr.f32.gmra.mxu0 %v604
        %v677 = vpop.f32.mrf.mxu0
        %v678 = vadd.f32 %v598, %v677
        %v679 = vpop.f32.mrf.mxu0
        %680 = vdwg.mxu0
        %v681 = vsub.f32 0.0, %v673
        %v682 = vsub.f32 0.0, %v678
        %v683 = vmul.f32 %v681, 1.442695
        %v684 = vpow.pop %v683
        %v685 = vmul.f32 %v682, 1.442695
        %v686 = vpow.pop %v685
        %v687 = vadd.f32 %v684, 1.0
        %v688 = vadd.f32 %v686, 1.0
        %v689 = vrcp.pop %v687
        %v690 = vrcp.pop %v688
        %v691 = vld [vmem:[%s7] sm:$0xff]
        %v692 = vld [vmem:[%s7 + $0x8] sm:$0xff]
        %v693 = vld [vmem:[%s7 + $0x10] sm:$0xff]
        %v694 = vld [vmem:[%s7 + $0x18] sm:$0xff]
        %v695 = vld [vmem:[%s7 + $0x20] sm:$0xff]
        %v696 = vld [vmem:[%s7 + $0x28] sm:$0xff]
        %v697 = vld [vmem:[%s7 + $0x30] sm:$0xff]
        %v698 = vld [vmem:[%s7 + $0x38] sm:$0xff]
        %v699 = vld [vmem:[%s7 + $0x40] sm:$0xff]
        %v700 = vld [vmem:[%s7 + $0x48] sm:$0xff]
        %v701 = vld [vmem:[%s7 + $0x50] sm:$0xff]
        %v702 = vld [vmem:[%s7 + $0x58] sm:$0xff]
        %v703 = vld [vmem:[%s7 + $0x60] sm:$0xff]
        %v704 = vld [vmem:[%s7 + $0x68] sm:$0xff]
        %v705 = vld [vmem:[%s7 + $0x70] sm:$0xff]
        %v706 = vld [vmem:[%s7 + $0x78] sm:$0xff]
        %v707 = vld [vmem:[%s8] sm:$0x3]
        %v709 = vlaneseq
        %v710 = vshrl.u32 %v709, 7
        %v711 = vsub.s32 0, %v710
        %v712 = vrot.slane %v707, %v711
        %v713 = vlaneseq
        %v714 = vshrl.u32 %v713, 7
        %v715 = vsub.s32 1, %v714
        %v716 = vrot.slane %v707, %v715
        %v720 = vsel %vm493, %v689, 0
        %v723 = vsel %vm493, %v690, 0
        %725 = vmatprep.subr.mxu0 0.0
        %726 = vmatpush1.msra.mxu0 0.0
        %727 = vmatprep.subr.mxu0 0.0
        %728 = vmatpush1.msra.mxu0 0.0
        %729 = vmatprep.subr.mxu0 0.0
        %730 = vmatpush1.msra.mxu0 0.0
        %731 = vmatprep.subr.mxu0 0.0
        %732 = vmatpush1.msra.mxu0 0.0
        %733 = vmatprep.subr.mxu0 0.0
        %734 = vmatpush1.msra.mxu0 0.0
        %735 = vmatprep.subr.mxu0 0.0
        %736 = vmatpush1.msra.mxu0 0.0
        %737 = vmatprep.subr.mxu0 0.0
        %738 = vmatpush1.msra.mxu0 0.0
        %739 = vmatprep.subr.mxu0 0.0
        %740 = vmatpush1.msra.mxu0 0.0
        %741 = vmatprep.subr.mxu0 %v706
        %742 = vmatpush1.msra.mxu0 %v705
        %743 = vmatprep.subr.mxu0 %v704
        %744 = vmatpush1.msra.mxu0 %v703
        %745 = vmatprep.subr.mxu0 %v702
        %746 = vmatpush1.msra.mxu0 %v701
        %747 = vmatprep.subr.mxu0 %v700
        %748 = vmatpush1.msra.mxu0 %v699
        %749 = vmatprep.subr.mxu0 %v698
        %750 = vmatpush1.msra.mxu0 %v697
        %751 = vmatprep.subr.mxu0 %v696
        %752 = vmatpush1.msra.mxu0 %v695
        %753 = vmatprep.subr.mxu0 %v694
        %754 = vmatpush1.msra.mxu0 %v693
        %755 = vmatprep.subr.mxu0 %v692
        %756 = vmatpush1.msra.mxu0 %v691
        %757 = vmatprep.subr.mxu0 0.0
        %758 = vmatpush2.msra.mxu0 0.0
        %759 = vmatprep.subr.mxu0 0.0
        %760 = vmatpush2.msra.mxu0 0.0
        %761 = vmatprep.subr.mxu0 0.0
        %762 = vmatpush2.msra.mxu0 0.0
        %763 = vmatprep.subr.mxu0 0.0
        %764 = vmatpush2.msra.mxu0 0.0
        %765 = vmatprep.subr.mxu0 0.0
        %766 = vmatpush2.msra.mxu0 0.0
        %767 = vmatprep.subr.mxu0 0.0
        %768 = vmatpush2.msra.mxu0 0.0
        %769 = vmatprep.subr.mxu0 0.0
        %770 = vmatpush2.msra.mxu0 0.0
        %771 = vmatprep.subr.mxu0 0.0
        %772 = vmatpush2.msra.mxu0 0.0
        %773 = vmatprep.subr.mxu0 0.0
        %774 = vmatpush2.msra.mxu0 0.0
        %775 = vmatprep.subr.mxu0 0.0
        %776 = vmatpush2.msra.mxu0 0.0
        %777 = vmatprep.subr.mxu0 0.0
        %778 = vmatpush2.msra.mxu0 0.0
        %779 = vmatprep.subr.mxu0 0.0
        %780 = vmatpush2.msra.mxu0 0.0
        %781 = vmatprep.subr.mxu0 0.0
        %782 = vmatpush2.msra.mxu0 0.0
        %783 = vmatprep.subr.mxu0 0.0
        %784 = vmatpush2.msra.mxu0 0.0
        %785 = vmatprep.subr.mxu0 0.0
        %786 = vmatpush2.msra.mxu0 0.0
        %787 = vmatprep.subr.mxu0 0.0
        %788 = vmatpush2.msra.mxu0 0.0
        %789 = vmatprep.mubr.f32.mxu0 0.0
        %790 = vmatmul.mubr.f32.gmra.mxu0 %v720
        %v791 = vpop.f32.mrf.mxu0
        %v792 = vadd.f32 %v712, %v791
        %v793 = vpop.f32.mrf.mxu0
        %v794 = vadd.f32 %v716, %v793
        %795 = vmatprep.mubr.f32.mxu0 0.0
        %796 = vmatmul.mubr.f32.gmra.mxu0 %v723
        %v797 = vpop.f32.mrf.mxu0
        %v798 = vadd.f32 %v712, %v797
        %v799 = vpop.f32.mrf.mxu0
        %v800 = vadd.f32 %v716, %v799
        %801 = vdwg.mxu0
        %802 = vst [vmem:[%s341] sm:$0xff] %v792
        %803 = vst [vmem:[%s341 + $0x8] sm:$0xff] %v794
        %804 = vst [vmem:[%s341 + $0x10] sm:$0xff] %v798
        %805 = vst [vmem:[%s341 + $0x18] sm:$0xff] %v800
        %s806 = sand.u32 %s226, 1
        %s807 = scalar_lea.sflag [#allocation4], %s806
        %s808 = sand.u32 %s226, 1
        %s809 = smul.addr %s808, 32
        %s810 = scalar_lea.vmem [#allocation5], %s809
        // Predicated region
        $region61: #{tpu_custom_call.1} parent=55 // pred_check
          %p811 = pneg %p236
        $region62: #{tpu_custom_call.1} parent=55 // pred_check_branch
          %813 = sbr.rel (%p811) target = $region64
        $region63: #{tpu_custom_call.1} parent=55 // pred_region
          %s814 = smul.u32 2, %s24
          %s816 = ssub.s32 512, 512
          %817 = vsyncadd %s807, %s816
          %s818 = smul.addr %s814, 2
          %s819 = smul.addr %s818, 128
          %s820 = scalar_lea.hbm %s9, %s819
          %s821 = sshll.u32 %s810, 4
          %s822 = int_to_ptr.vmem [resolvable:$true] %s821
          %827 = dma.vmem_to_hbm [thread:$0]  %s822, 512, %s820, %s807, 256, 256, 16
        $region64: #{tpu_custom_call.1} parent=55 // pred_fallthru
          _
      $region56: #{tpu_custom_call.1} parent=5 // pred_fallthru
        _
      %p828 = scmp.le.s32.totalorder 2, %s19
      // Predicated region
      $region65: #{tpu_custom_call.1} parent=5 // pred_check
        %p829 = pneg %p828
      $region66: #{tpu_custom_call.1} parent=5 // pred_check_branch
        %831 = sbr.rel (%p829) target = $region68
      $region67: #{tpu_custom_call.1} parent=5 // pred_region
        %s832 = ssub.s32 %s19, 2
        // Predicated region
        $region69: #{tpu_custom_call.1} parent=67 // pred_check
          %p833 = pneg %p242
        $region70: #{tpu_custom_call.1} parent=67 // pred_check_branch
          %835 = sbr.rel (%p833) target = $region72
        $region71: #{tpu_custom_call.1} parent=67 // pred_region
          %s836 = sand.u32 %s227, 1
          %s837 = scalar_lea.sflag [#allocation4], %s836
          %s838 = sand.u32 %s227, 1
          %s839 = smul.addr %s838, 32
          %s840 = scalar_lea.vmem [#allocation5], %s839
          %841 = dma.done %s837, 512
        $region72: #{tpu_custom_call.1} parent=67 // pred_fallthru
          _
      $region68: #{tpu_custom_call.1} parent=5 // pred_fallthru
        _
    $region6: #{tpu_custom_call.1} parent=1 // loop_footer
      %s23 = sadd.s32 1, %s19
    $region7: #{tpu_custom_call.1} parent=1 // loop_footer_branch
      %18 = sbr.rel target = $region3
    $region8: #{tpu_custom_call.1} parent=1 // loop_exit
      _
    %842 = vsyncpa [#allocation3], 1
    %s843 = scalar_lea.sflag [#allocation3], 1
    %844 = vsyncpa %s843, 1
    %845 = vsyncpa [#allocation4], 1
    %s846 = scalar_lea.sflag [#allocation4], 1
    %847 = vsyncpa %s846, 1

</llo_original>
